<compile_context>
chip_gen: v7x
topology: tpu7x:2x2x1
jax: 0.10.0
libtpu: 0.0.40
codegen_flags: <defaults>
</compile_context>

<pallas_src>
import jax
import jax.numpy as jnp
from jax.experimental import pallas as pl
from jax.experimental.pallas import tpu as pltpu

IN_DIM = 250            # logical reduction dim (concatenated window embeddings)
OUT_DIM = 5             # number of NER tags
TILE_B_DEFAULT = 4096   # fits v5e/v6e scoped-VMEM defaults (16/32 MiB)
TILE_B_V7X = 8192       # v7x: bigger tile amortizes per-step overhead
SMALL_BATCH_FALLBACK = 1024   # below this, plain XLA fusion is strictly faster


def _round_up(n, m):
    return ((n + m - 1) // m) * m


def _tile_b_max():
    """Per-generation batch-tile ceiling (best effort; safe fallback)."""
    try:
        kind = jax.devices()[0].device_kind.lower()
    except Exception:
        kind = ""
    if "v7" in kind or "7x" in kind:
        return TILE_B_V7X
    return TILE_B_DEFAULT


def ner_kernel(x_ref, w_ref, b_ref, o_ref):
    # x: (tile_b, 250), w: (250, 5), b: (1, 5) -- all resident in VMEM.
    # MXU matmul with f32 accumulation, bias-add on VPU, tanh on EUP.
    y = jnp.dot(x_ref[...], w_ref[...], preferred_element_type=jnp.float32)
    o_ref[...] = jnp.tanh(y + b_ref[...])


def ner_forward(x, w00, b00, *, tile_b=None, force_pallas=False):
    """x: (B, 250), w00: (250, 5), b00: (5,) -> (B, 5) float32."""
    B = x.shape[0]
    x = x.astype(jnp.float32)
    w00 = w00.astype(jnp.float32)
    b00 = b00.astype(jnp.float32)

    if B == 0:
        return jnp.zeros((0, OUT_DIM), jnp.float32)

    # Tiny batches: kernel dispatch overhead dwarfs the work; let XLA fuse it.
    if not force_pallas and B <= SMALL_BATCH_FALLBACK and tile_b is None:
        return jnp.tanh(x @ w00 + b00)

    # Pick the batch tile: large enough to amortize the ~0.35 us per-step
    # overhead, small enough to double-buffer inside the scoped-VMEM limits,
    # balanced (cdiv) so padding/imbalance is bounded, and with >=2 grid
    # steps so both v7x TensorCores get work.
    if tile_b is None:
        tile_b_max = _tile_b_max()
        n_steps = max(2, -(-B // tile_b_max))          # ceil-div, min 2 steps
        tile_b = _round_up(-(-B // n_steps), 8)
    tile_b = max(8, _round_up(tile_b, 8))

    grid = (pl.cdiv(B, tile_b),)
    b2d = b00.reshape(1, OUT_DIM)

    # VMEM budget (per buffer, lane-padded inside VMEM): x tile ~ tile_b*256*4,
    # output tile ~ tile_b*128*4. Raise the scoped limit only when a big
    # (v7x-sized) tile needs it; stays well under 64 MiB physical.
    est_vmem = 2 * tile_b * 256 * 4 + 2 * tile_b * 128 * 4 + (1 << 20)
    compiler_kwargs = dict(dimension_semantics=("parallel",))
    if est_vmem > (24 << 20):
        compiler_kwargs["vmem_limit_bytes"] = min(est_vmem + (8 << 20), 48 << 20)

    out = pl.pallas_call(
        ner_kernel,
        out_shape=jax.ShapeDtypeStruct((B, OUT_DIM), jnp.float32),
        grid=grid,
        in_specs=[
            # x: one batch tile per grid step; full (unpadded) K=250 as the
            # last dim; final block may be partial (masked on store).
            pl.BlockSpec((tile_b, IN_DIM), lambda i: (i, 0)),
            # Weight and bias are grid-invariant (stay resident in VMEM).
            pl.BlockSpec((IN_DIM, OUT_DIM), lambda i: (0, 0)),
            pl.BlockSpec((1, OUT_DIM), lambda i: (0, 0)),
        ],
        out_specs=pl.BlockSpec((tile_b, OUT_DIM), lambda i: (i, 0)),
        compiler_params=pltpu.CompilerParams(**compiler_kwargs),
        cost_estimate=pl.CostEstimate(
            flops=2 * B * IN_DIM * OUT_DIM,
            transcendentals=B * OUT_DIM,
            bytes_accessed=4 * (B * IN_DIM + IN_DIM * OUT_DIM + B * OUT_DIM),
        ),
    )(x, w00, b2d)
    return out


if __name__ == "__main__":
    key = jax.random.PRNGKey(0)
    k_x, k_w, k_b, k_x2, k_x3 = jax.random.split(key, 5)

    # Deterministic "randn"-style parameter init (shapes from __init__).
    # TODO(synk): module params are float64; TPU kernel computes in float32.
    w00 = jax.random.normal(k_w, (IN_DIM, OUT_DIM), dtype=jnp.float32)
    b00 = jax.random.normal(k_b, (OUT_DIM,), dtype=jnp.float32)

    # Case 1: tiny batch, force the Pallas path (single grid step).
    batch = 8
    x = jax.random.normal(k_x, (batch, IN_DIM), dtype=jnp.float32)
    out = ner_forward(x, w00, b00, force_pallas=True)
    jax.block_until_ready(out)
    ref = jnp.tanh(x @ w00 + b00)
    assert out.shape == (batch, OUT_DIM)
    assert jnp.allclose(out, ref, atol=1e-5, rtol=1e-5)

    # Case 2: non-multiple batch with a forced small tile -> multi-step grid
    # (grid=4) with a partial final block, no host-side padding anywhere.
    batch2 = 200
    x2 = jax.random.normal(k_x2, (batch2, IN_DIM), dtype=jnp.float32)
    out2 = ner_forward(x2, w00, b00, tile_b=64)
    jax.block_until_ready(out2)
    ref2 = jnp.tanh(x2 @ w00 + b00)
    assert out2.shape == (batch2, OUT_DIM)
    assert jnp.allclose(out2, ref2, atol=1e-5, rtol=1e-5)

    # Case 3: auto tile selection (>=2 balanced steps) through the kernel,
    # plus the small-batch XLA-fusion fallback path for coverage.
    batch3 = 300
    x3 = jax.random.normal(k_x3, (batch3, IN_DIM), dtype=jnp.float32)
    out3 = ner_forward(x3, w00, b00, force_pallas=True)
    out3_auto = ner_forward(x3, w00, b00)  # <=1024 -> fused XLA fallback
    jax.block_until_ready((out3, out3_auto))
    ref3 = jnp.tanh(x3 @ w00 + b00)
    assert jnp.allclose(out3, ref3, atol=1e-5, rtol=1e-5)
    assert jnp.allclose(out3_auto, ref3, atol=1e-5, rtol=1e-5)

    print("KERNEL_OK")
</pallas_src>

<mosaic_0001>
module attributes {stable_mosaic.version = 11 : i64} {
  func.func @ner_kernel(%arg0: i32, %arg1: memref<8x250xf32, #tpu.memory_space<vmem>>, %arg2: memref<250x5xf32, #tpu.memory_space<vmem>>, %arg3: memref<1x5xf32, #tpu.memory_space<vmem>>, %arg4: memref<8x5xf32, #tpu.memory_space<vmem>>) attributes {dimension_semantics = [#tpu.dimension_semantics<parallel>], iteration_bounds = array<i64: 1>, scalar_prefetch = 0 : i64, scratch_operands = 0 : i64, tpu.core_type = #tpu.core_type<tc>, window_params = [{transform_indices = @transform_0, window_bounds = array<i64: 8, 250>}, {pipeline_mode = #tpu.pipeline_mode<synchronous>, transform_indices = @transform_1, window_bounds = array<i64: 250, 5>}, {pipeline_mode = #tpu.pipeline_mode<synchronous>, transform_indices = @transform_2, window_bounds = array<i64: 1, 5>}, {transform_indices = @transform_3, window_bounds = array<i64: 8, 5>}]} {
    %c0 = arith.constant 0 : index
    %c0_0 = arith.constant 0 : index
    %0 = vector.load %arg1[%c0, %c0_0] : memref<8x250xf32, #tpu.memory_space<vmem>>, vector<8x250xf32>
    %c0_1 = arith.constant 0 : index
    %c0_2 = arith.constant 0 : index
    %1 = vector.load %arg2[%c0_1, %c0_2] : memref<250x5xf32, #tpu.memory_space<vmem>>, vector<250x5xf32>
    %cst = arith.constant dense<0.000000e+00> : vector<8x5xf32>
    %2 = tpu.matmul %0, %1, %cst {dimension_numbers = #tpu.dot_dimension_numbers<[1], [0], [0], [1], [0, 0, 1, 1], [], []>} : vector<8x250xf32>, vector<250x5xf32>, vector<8x5xf32> -> vector<8x5xf32>
    %c0_3 = arith.constant 0 : index
    %c0_4 = arith.constant 0 : index
    %3 = vector.load %arg3[%c0_3, %c0_4] : memref<1x5xf32, #tpu.memory_space<vmem>>, vector<1x5xf32>
    %4 = vector.broadcast %3 : vector<1x5xf32> to vector<8x5xf32>
    %5 = arith.addf %2, %4 : vector<8x5xf32>
    %6 = math.tanh %5 : vector<8x5xf32>
    %c0_5 = arith.constant 0 : index
    %c0_6 = arith.constant 0 : index
    %7 = vector.load %arg4[%c0_5, %c0_6] : memref<8x5xf32, #tpu.memory_space<vmem>>, vector<8x5xf32>
    tpu.vector_store %arg4[%c0_5, %c0_6], %6 {strides = array<i32>} : memref<8x5xf32, #tpu.memory_space<vmem>>, vector<8x5xf32>,
    return
  }
  func.func @transform_0(%arg0: i32) -> (i32, i32) {
    %c0_i32 = arith.constant 0 : i32
    %c0_i32_0 = arith.constant 0 : i32
    return %arg0, %c0_i32 : i32, i32
  }
  func.func @transform_1(%arg0: i32) -> (i32, i32) {
    %c0_i32 = arith.constant 0 : i32
    %c0_i32_0 = arith.constant 0 : i32
    %c0_i32_1 = arith.constant 0 : i32
    return %c0_i32, %c0_i32_0 : i32, i32
  }
  func.func @transform_2(%arg0: i32) -> (i32, i32) {
    %c0_i32 = arith.constant 0 : i32
    %c0_i32_0 = arith.constant 0 : i32
    %c0_i32_1 = arith.constant 0 : i32
    return %c0_i32, %c0_i32_0 : i32, i32
  }
  func.func @transform_3(%arg0: i32) -> (i32, i32) {
    %c0_i32 = arith.constant 0 : i32
    %c0_i32_0 = arith.constant 0 : i32
    return %arg0, %c0_i32 : i32, i32
  }
}

</mosaic_0001>

<llo_original>
// kernel: tpu_custom_call.1
$region0: #{tpu_custom_call.1}
  #allocation0 [shape = 'u32[]', space=smem, size = 0x4, offset = 0x4, fixed_abs, tag = 'smem constant byte address 0x4 - core index']
  #allocation1 [shape = 'u32[144,128]{1,0:T(1,128)}', space=vmem, size = 0x12000, scoped, tag = 'internal scratch']
  %s0 = inlined_call_operand.vmem [shape: f32[8,250], index: 0, kind: input, shape index: {}]
  %s1 = inlined_call_operand.vmem [shape: f32[250,5], index: 1, kind: input, shape index: {}]
  %s2 = inlined_call_operand.vmem [shape: f32[1,5], index: 2, kind: input, shape index: {}]
  %s3 = inlined_call_operand.hbm [shape: f32[8,5], index: 3, kind: output, shape index: {}]
  %s4 = sld [smem:[#allocation0]]
  $region22: #{tpu_custom_call.1} parent=0
    _
  %s6 = ssub.s32 1, %s4
  %s7 = scalar_select 0, %s6, %s4
  $region1: #{tpu_custom_call.1} parent=0
    #allocation2 [shape = 'u8[4096]{0}', space=vmem, size = 0x1000, scoped, tag = 'output window, operand 0, single buffered']
    #allocation3 [shape = 's32[1]{0}', space=sflag, size = 0x4, scoped, tag = 'scoped memory for tpu_custom_call.1']
    %8 = vsyncpa [#allocation3], 0
    // Predicated region
    $region2: #{tpu_custom_call.1} parent=1 // pred_check
      _
    $region3: #{tpu_custom_call.1} parent=1 // pred_check_branch
      %10 = sbr.rel (0) target = $region5
    $region4: #{tpu_custom_call.1} parent=1 // pred_region
      _
    $region5: #{tpu_custom_call.1} parent=1 // pred_fallthru
      _
    // Predicated region
    $region6: #{tpu_custom_call.1} parent=1 // pred_check
      _
    $region7: #{tpu_custom_call.1} parent=1 // pred_check_branch
      %12 = sbr.rel (0) target = $region9
    $region8: #{tpu_custom_call.1} parent=1 // pred_region
      _
    $region9: #{tpu_custom_call.1} parent=1 // pred_fallthru
      _
    // Predicated region
    $region10: #{tpu_custom_call.1} parent=1 // pred_check
      _
    $region11: #{tpu_custom_call.1} parent=1 // pred_check_branch
      %14 = sbr.rel (0) target = $region13
    $region12: #{tpu_custom_call.1} parent=1 // pred_region
      _
    $region13: #{tpu_custom_call.1} parent=1 // pred_fallthru
      _
    %v15 = vld [vmem:[%s0] sm:$0xff]
    %v16 = vld [vmem:[%s0 + $0x8] sm:$0xff]
    %v17 = vld [vmem:[%s1] sm:$0xff]
    %v18 = vld [vmem:[%s1 + $0x8] sm:$0xff]
    %v19 = vld [vmem:[%s1 + $0x10] sm:$0xff]
    %v20 = vld [vmem:[%s1 + $0x18] sm:$0xff]
    %v21 = vld [vmem:[%s1 + $0x20] sm:$0xff]
    %v22 = vld [vmem:[%s1 + $0x28] sm:$0xff]
    %v23 = vld [vmem:[%s1 + $0x30] sm:$0xff]
    %v24 = vld [vmem:[%s1 + $0x38] sm:$0xff]
    %v25 = vld [vmem:[%s1 + $0x40] sm:$0xff]
    %v26 = vld [vmem:[%s1 + $0x48] sm:$0xff]
    %v27 = vld [vmem:[%s1 + $0x50] sm:$0xff]
    %v28 = vld [vmem:[%s1 + $0x58] sm:$0xff]
    %v29 = vld [vmem:[%s1 + $0x60] sm:$0xff]
    %v30 = vld [vmem:[%s1 + $0x68] sm:$0xff]
    %v31 = vld [vmem:[%s1 + $0x70] sm:$0xff]
    %v32 = vld [vmem:[%s1 + $0x78] sm:$0xff]
    %v33 = vld [vmem:[%s1 + $0x80] sm:$0xff]
    %v34 = vld [vmem:[%s1 + $0x88] sm:$0xff]
    %v35 = vld [vmem:[%s1 + $0x90] sm:$0xff]
    %v36 = vld [vmem:[%s1 + $0x98] sm:$0xff]
    %v37 = vld [vmem:[%s1 + $0xa0] sm:$0xff]
    %v38 = vld [vmem:[%s1 + $0xa8] sm:$0xff]
    %v39 = vld [vmem:[%s1 + $0xb0] sm:$0xff]
    %v40 = vld [vmem:[%s1 + $0xb8] sm:$0xff]
    %v41 = vld [vmem:[%s1 + $0xc0] sm:$0xff]
    %v42 = vld [vmem:[%s1 + $0xc8] sm:$0xff]
    %v43 = vld [vmem:[%s1 + $0xd0] sm:$0xff]
    %v44 = vld [vmem:[%s1 + $0xd8] sm:$0xff]
    %v45 = vld [vmem:[%s1 + $0xe0] sm:$0xff]
    %v46 = vld [vmem:[%s1 + $0xe8] sm:$0xff]
    %v47 = vld [vmem:[%s1 + $0xf0] sm:$0xff]
    %v48 = vld [vmem:[%s1 + $0xf8] sm:$0x3]
    %v49 = vld [vmem:[%s2] sm:$0x1]
    %v51 = vlaneseq
    %v52 = vshrl.u32 %v51, 7
    %v53 = vsub.s32 0, %v52
    %v54 = vrot.slane %v49, %v53
    %vm56 = vcmask 998400
    %v58 = vsel %vm56, %v16, 0
    %vm60 = vcmask 1041408
    %v62 = vsel %vm60, %v48, 0
    %64 = vmatprep.subr.mxu0 0.0
    %65 = vmatpush1.msra.mxu0 %v17
    %66 = vmatprep.subr.mxu0 0.0
    %67 = vmatpush1.msra.mxu0 %v18
    %68 = vmatprep.subr.mxu0 0.0
    %69 = vmatpush1.msra.mxu0 %v19
    %70 = vmatprep.subr.mxu0 0.0
    %71 = vmatpush1.msra.mxu0 %v20
    %72 = vmatprep.subr.mxu0 0.0
    %73 = vmatpush1.msra.mxu0 %v21
    %74 = vmatprep.subr.mxu0 0.0
    %75 = vmatpush1.msra.mxu0 %v22
    %76 = vmatprep.subr.mxu0 0.0
    %77 = vmatpush1.msra.mxu0 %v23
    %78 = vmatprep.subr.mxu0 0.0
    %79 = vmatpush1.msra.mxu0 %v24
    %80 = vmatprep.subr.mxu0 0.0
    %81 = vmatpush1.msra.mxu0 %v25
    %82 = vmatprep.subr.mxu0 0.0
    %83 = vmatpush1.msra.mxu0 %v26
    %84 = vmatprep.subr.mxu0 0.0
    %85 = vmatpush1.msra.mxu0 %v27
    %86 = vmatprep.subr.mxu0 0.0
    %87 = vmatpush1.msra.mxu0 %v28
    %88 = vmatprep.subr.mxu0 0.0
    %89 = vmatpush1.msra.mxu0 %v29
    %90 = vmatprep.subr.mxu0 0.0
    %91 = vmatpush1.msra.mxu0 %v30
    %92 = vmatprep.subr.mxu0 0.0
    %93 = vmatpush1.msra.mxu0 %v31
    %94 = vmatprep.subr.mxu0 0.0
    %95 = vmatpush1.msra.mxu0 %v32
    %96 = vmatprep.subr.mxu0 0.0
    %97 = vmatpush1.msra.mxu0 %v33
    %98 = vmatprep.subr.mxu0 0.0
    %99 = vmatpush1.msra.mxu0 %v34
    %100 = vmatprep.subr.mxu0 0.0
    %101 = vmatpush1.msra.mxu0 %v35
    %102 = vmatprep.subr.mxu0 0.0
    %103 = vmatpush1.msra.mxu0 %v36
    %104 = vmatprep.subr.mxu0 0.0
    %105 = vmatpush1.msra.mxu0 %v37
    %106 = vmatprep.subr.mxu0 0.0
    %107 = vmatpush1.msra.mxu0 %v38
    %108 = vmatprep.subr.mxu0 0.0
    %109 = vmatpush1.msra.mxu0 %v39
    %110 = vmatprep.subr.mxu0 0.0
    %111 = vmatpush1.msra.mxu0 %v40
    %112 = vmatprep.subr.mxu0 0.0
    %113 = vmatpush1.msra.mxu0 %v41
    %114 = vmatprep.subr.mxu0 0.0
    %115 = vmatpush1.msra.mxu0 %v42
    %116 = vmatprep.subr.mxu0 0.0
    %117 = vmatpush1.msra.mxu0 %v43
    %118 = vmatprep.subr.mxu0 0.0
    %119 = vmatpush1.msra.mxu0 %v44
    %120 = vmatprep.subr.mxu0 0.0
    %121 = vmatpush1.msra.mxu0 %v45
    %122 = vmatprep.subr.mxu0 0.0
    %123 = vmatpush1.msra.mxu0 %v46
    %124 = vmatprep.subr.mxu0 0.0
    %125 = vmatpush1.msra.mxu0 %v47
    %126 = vmatprep.subr.mxu0 0.0
    %127 = vmatpush1.msra.mxu0 %v62
    %128 = vmatprep.mubr.f32.mxu0 %v58
    %129 = vmatmul.mubr.f32.gmra.mrb[0].mxu0 %v15
    %v130 = vpop.f32.mrb[0].mxu0
    %v131 = vadd.f32 %v54, %v130
    %v132 = vpop.f32.mrb[0].mxu0
    %133 = vdwg.mxu0
    %v134 = vtanh.pop %v131
    %vm135 = vcmask 39936
    %136 = vst.msk [vmem:[#allocation2] sm:$0xff] %vm135, %v134
    // Predicated region
    $region14: #{tpu_custom_call.1} parent=1 // pred_check
      _
    $region15: #{tpu_custom_call.1} parent=1 // pred_check_branch
      %138 = sbr.rel (0) target = $region17
    $region16: #{tpu_custom_call.1} parent=1 // pred_region
      %s140 = ssub.s32 128, 128
      %141 = vsyncadd [#allocation3], %s140
      %s143 = sshll.u32 [#allocation2], 4
      %s144 = int_to_ptr.vmem [resolvable:$true] %s143
      %146 = dma.vmem_to_hbm [thread:$0]  %s144, 128, %s3, [#allocation3]
    $region17: #{tpu_custom_call.1} parent=1 // pred_fallthru
      _
    // Predicated region
    $region18: #{tpu_custom_call.1} parent=1 // pred_check
      _
    $region19: #{tpu_custom_call.1} parent=1 // pred_check_branch
      %148 = sbr.rel (0) target = $region21
    $region20: #{tpu_custom_call.1} parent=1 // pred_region
      %149 = dma.done [#allocation3], 128
    $region21: #{tpu_custom_call.1} parent=1 // pred_fallthru
      _
    %150 = vsyncpa [#allocation3], 1

</llo_original>
